<compile_context>
chip_gen: v7x
topology: tpu7x:2x2x1
jax: 0.10.0
libtpu: 0.0.40
codegen_flags: <defaults>
</compile_context>

<pallas_src>
import jax
import jax.numpy as jnp
from jax.experimental import pallas as pl

# Small, forward-consistent shapes (residual X + conv(X) requires in_ch == out_ch).
N_CONV = 3          # n_conv_layers
N = 8               # batch (8 -> all sublanes live)
C = 8               # input_channels == output_channels
L = 16              # sequence_length
HID = 100           # linear1 hidden size (fixed by the module)
HID_PAD = 128       # zero-padded hidden size (lane-dense)
FEAT = C * L        # output_channels * sequence_length = 128
EPS = 1e-5          # BatchNorm eps (PyTorch default)

# Row layout of the packed (VEC_ROWS, 128) f32 vector slab.
ROW_B1 = N_CONV          # linear1 bias
ROW_G1 = N_CONV + 1      # bn1 gamma
ROW_BT1 = N_CONV + 2     # bn1 beta
ROW_B2 = N_CONV + 3      # linear2 bias
ROW_G2 = N_CONV + 4      # bn2 gamma
ROW_BT2 = N_CONV + 5     # bn2 beta
VEC_ROWS = 16            # pad rows to a sublane multiple


def wavenet_kernel(x_ref, m_ref, w1_ref, w2_ref, vec_ref, out_ref):
    mdt = m_ref.dtype                               # matmul-operand dtype (f32 or bf16)
    x = x_ref[...]                                  # (N, FEAT) f32, flatten order c*L+l

    # Dilated residual conv stack: one full-K=128 MXU matmul per layer.
    acc = None
    for i in range(N_CONV):
        y = jnp.dot(x.astype(mdt), m_ref[i],
                    preferred_element_type=jnp.float32)
        y = jnp.maximum(y + vec_ref[i:i + 1, :], 0.0)    # + conv bias, relu
        acc = y if acc is None else acc + y              # sum += relu(conv(X))
        x = x + y                                        # X = relu(conv(X)) + X

    # Flatten is a no-op in this layout; 1/n_conv is folded into w1.
    h = jnp.dot(acc.astype(mdt), w1_ref[...],
                preferred_element_type=jnp.float32) + vec_ref[ROW_B1:ROW_B1 + 1, :]
    h = jnp.maximum(h, 0.0)                              # relu(linear1)

    # BatchNorm1d #1 (training mode: biased batch statistics over the batch dim).
    # Padded lanes (100..127) are exactly 0 (zero-padded bias/gamma/beta) and stay 0.
    mu = jnp.mean(h, axis=0, keepdims=True)
    var = jnp.mean(h * h, axis=0, keepdims=True) - mu * mu
    scale = vec_ref[ROW_G1:ROW_G1 + 1, :] * jax.lax.rsqrt(var + EPS)
    h = h * scale + (vec_ref[ROW_BT1:ROW_BT1 + 1, :] - mu * scale)

    # linear2 + relu + BatchNorm1d #2
    h2 = jnp.dot(h.astype(mdt), w2_ref[...],
                 preferred_element_type=jnp.float32) + vec_ref[ROW_B2:ROW_B2 + 1, :]
    h2 = jnp.maximum(h2, 0.0)
    mu2 = jnp.mean(h2, axis=0, keepdims=True)
    var2 = jnp.mean(h2 * h2, axis=0, keepdims=True) - mu2 * mu2
    scale2 = vec_ref[ROW_G2:ROW_G2 + 1, :] * jax.lax.rsqrt(var2 + EPS)
    out_ref[...] = h2 * scale2 + (vec_ref[ROW_BT2:ROW_BT2 + 1, :] - mu2 * scale2)


def _shift_matrix(s):
    # R[l, m] = 1 if l == m + s, so (x @ R)[..., m] = x[..., m + s] (0 if OOB).
    l_idx = jnp.arange(L)[:, None]
    m_idx = jnp.arange(L)[None, :]
    return (l_idx == m_idx + s).astype(jnp.float32)


def prepare_params(p, mxu_dtype=jnp.bfloat16):
    """One-time parameter re-layout — hoisted OUT of the per-call path.

    Combined per-layer conv operator in flatten order:
      M[c*L+l, o*L+m] = W0[o,c]*R0[l,m] + W1[o,c]*R1[l,m]
    (time-shift and channel-mix commute across axes; the two taps sum into one op).
    """
    ops = []
    for i in range(N_CONV):
        d = 2 ** i                                   # dilation
        left = d // 2                                # PyTorch 'same' left pad
        r0 = _shift_matrix(-left)                    # tap k=0 reads x[t - left]
        r1 = _shift_matrix(d - left)                 # tap k=1 reads x[t + d - left]
        w0 = p['conv_w'][i, :, :, 0]                 # (C_out, C_in)
        w1 = p['conv_w'][i, :, :, 1]
        m = (jnp.einsum('oc,lm->clom', w0, r0)
             + jnp.einsum('oc,lm->clom', w1, r1)).reshape(FEAT, FEAT)
        ops.append(m)
    conv_op = jnp.stack(ops).astype(mxu_dtype)       # (N_CONV, FEAT, FEAT)

    pad = HID_PAD - HID
    # linear1: transpose, fold 1/N_CONV, zero-pad hidden dim to 128.
    w1p = jnp.pad(p['lin1_w'].T / float(N_CONV),
                  ((0, 0), (0, pad))).astype(mxu_dtype)            # (FEAT, HID_PAD)
    # linear2: transpose, zero-pad the (now 128-wide) contraction dim.
    w2p = jnp.pad(p['lin2_w'].T, ((0, pad), (0, 0))).astype(mxu_dtype)  # (HID_PAD, FEAT)

    # Pack all small vector operands into one lane-dense (VEC_ROWS, 128) f32 slab.
    rows = jnp.concatenate([
        jnp.repeat(p['conv_b'], L, axis=-1),          # rows 0..N_CONV-1: conv biases
        jnp.pad(p['lin1_b'], (0, pad))[None, :],      # ROW_B1
        jnp.pad(p['bn1_g'], (0, pad))[None, :],       # ROW_G1
        jnp.pad(p['bn1_b'], (0, pad))[None, :],       # ROW_BT1
        p['lin2_b'][None, :],                         # ROW_B2
        p['bn2_g'][None, :],                          # ROW_G2
        p['bn2_b'][None, :],                          # ROW_BT2
    ], axis=0)
    vec = jnp.pad(rows, ((0, VEC_ROWS - rows.shape[0]), (0, 0))).astype(jnp.float32)

    return dict(conv_op=conv_op, w1p=w1p, w2p=w2p, vec=vec)


@jax.jit
def wavenet_pallas(x, prep):
    # Per-call path: reshape only (flatten order c*L + l) + one pallas dispatch.
    x_flat = x.reshape(N, FEAT).astype(jnp.float32)
    return pl.pallas_call(
        wavenet_kernel,
        out_shape=jax.ShapeDtypeStruct((N, FEAT), jnp.float32),
    )(x_flat, prep['conv_op'], prep['w1p'], prep['w2p'], prep['vec'])


def wavenet_reference(x, p):
    # Pure-JAX reference mirroring the PyTorch forward (training-mode BN).
    s = jnp.zeros_like(x)
    X = x
    for i in range(N_CONV):
        d = 2 ** i
        left = d // 2
        right = d - left
        y = jax.lax.conv_general_dilated(
            X, p['conv_w'][i], window_strides=(1,), padding=[(left, right)],
            rhs_dilation=(d,), dimension_numbers=('NCH', 'OIH', 'NCH'))
        y = jnp.maximum(y + p['conv_b'][i][None, :, None], 0.0)
        s = s + y
        X = y + X
    s = s / N_CONV
    flat = s.reshape(N, FEAT)
    h = jnp.maximum(flat @ p['lin1_w'].T + p['lin1_b'], 0.0)
    mu, var = h.mean(0), ((h - h.mean(0)) ** 2).mean(0)
    h = p['bn1_g'] * (h - mu) / jnp.sqrt(var + EPS) + p['bn1_b']
    h2 = jnp.maximum(h @ p['lin2_w'].T + p['lin2_b'], 0.0)
    mu2, var2 = h2.mean(0), ((h2 - h2.mean(0)) ** 2).mean(0)
    return p['bn2_g'] * (h2 - mu2) / jnp.sqrt(var2 + EPS) + p['bn2_b']


def init_params(key):
    ks = jax.random.split(key, 10)
    return dict(
        conv_w=0.3 * jax.random.normal(ks[0], (N_CONV, C, C, 2), jnp.float32),
        conv_b=0.1 * jax.random.normal(ks[1], (N_CONV, C), jnp.float32),
        lin1_w=0.1 * jax.random.normal(ks[2], (HID, FEAT), jnp.float32),
        lin1_b=0.1 * jax.random.normal(ks[3], (HID,), jnp.float32),
        lin2_w=0.1 * jax.random.normal(ks[4], (FEAT, HID), jnp.float32),
        lin2_b=0.1 * jax.random.normal(ks[5], (FEAT,), jnp.float32),
        bn1_g=1.0 + 0.1 * jax.random.normal(ks[6], (HID,), jnp.float32),
        bn1_b=0.1 * jax.random.normal(ks[7], (HID,), jnp.float32),
        bn2_g=1.0 + 0.1 * jax.random.normal(ks[8], (FEAT,), jnp.float32),
        bn2_b=0.1 * jax.random.normal(ks[9], (FEAT,), jnp.float32),
    )


if __name__ == "__main__":
    key = jax.random.PRNGKey(0)
    kx, kp = jax.random.split(key)
    x = jax.random.normal(kx, (N, C, L), jnp.float32)
    params = init_params(kp)

    ref = wavenet_reference(x, params)

    # Strict parity mode: f32 matmul operands, <1e-3 vs. the f32 reference.
    prep_f32 = prepare_params(params, jnp.float32)
    out_f32 = jax.block_until_ready(wavenet_pallas(x, prep_f32))
    assert out_f32.shape == (N, FEAT), out_f32.shape
    err_f32 = float(jnp.max(jnp.abs(out_f32 - ref)))
    assert err_f32 < 1e-3, f"f32 max abs diff {err_f32}"

    # Production mode: bf16 matmul operands in HBM (halves weight DMA / MXU passes),
    # f32 accumulation / relu / BatchNorm inside the kernel. Training-mode BatchNorm
    # over a batch of only 8 can arbitrarily amplify bf16 operand rounding for
    # near-zero-variance features, so only shape/finiteness is asserted here; the
    # f32 mode above is the strict semantic check.
    prep_bf16 = prepare_params(params, jnp.bfloat16)
    out_bf16 = jax.block_until_ready(wavenet_pallas(x, prep_bf16))
    assert out_bf16.shape == (N, FEAT), out_bf16.shape
    assert bool(jnp.all(jnp.isfinite(out_bf16)))

    # TODO(synk): BatchNorm running_mean/running_var updates (training-side state)
    # are not modeled; only the forward output is reproduced.
    print("KERNEL_OK")
</pallas_src>

<mosaic_0001>
module attributes {stable_mosaic.version = 11 : i64} {
  func.func @wavenet_kernel(%arg0: memref<8x128xf32, #tpu.memory_space<vmem>>, %arg1: memref<3x128x128xf32, #tpu.memory_space<vmem>>, %arg2: memref<128x128xf32, #tpu.memory_space<vmem>>, %arg3: memref<128x128xf32, #tpu.memory_space<vmem>>, %arg4: memref<16x128xf32, #tpu.memory_space<vmem>>, %arg5: memref<8x128xf32, #tpu.memory_space<vmem>>) attributes {dimension_semantics = [], scalar_prefetch = 0 : i64, scratch_operands = 0 : i64, tpu.core_type = #tpu.core_type<tc>} {
    %c0 = arith.constant 0 : index
    %c0_0 = arith.constant 0 : index
    %0 = vector.load %arg0[%c0, %c0_0] : memref<8x128xf32, #tpu.memory_space<vmem>>, vector<8x128xf32>
    %c0_1 = arith.constant 0 : index
    %c0_2 = arith.constant 0 : index
    %c0_3 = arith.constant 0 : index
    %1 = vector.load %arg1[%c0_1, %c0_2, %c0_3] : memref<3x128x128xf32, #tpu.memory_space<vmem>>, vector<1x128x128xf32>
    %2 = vector.shape_cast %1 : vector<1x128x128xf32> to vector<128x128xf32>
    %cst = arith.constant dense<0.000000e+00> : vector<8x128xf32>
    %3 = tpu.matmul %0, %2, %cst {dimension_numbers = #tpu.dot_dimension_numbers<[1], [0], [0], [1], [0, 0, 1, 1], [], []>} : vector<8x128xf32>, vector<128x128xf32>, vector<8x128xf32> -> vector<8x128xf32>
    %c0_4 = arith.constant 0 : index
    %c0_5 = arith.constant 0 : index
    %4 = vector.load %arg4[%c0_4, %c0_5] : memref<16x128xf32, #tpu.memory_space<vmem>>, vector<1x128xf32>
    %5 = vector.broadcast %4 : vector<1x128xf32> to vector<8x128xf32>
    %6 = arith.addf %3, %5 : vector<8x128xf32>
    %cst_6 = arith.constant 0.000000e+00 : f32
    %7 = vector.broadcast %cst_6 : f32 to vector<8x128xf32>
    %8 = arith.maximumf %6, %7 : vector<8x128xf32>
    %9 = arith.addf %0, %8 : vector<8x128xf32>
    %c1 = arith.constant 1 : index
    %c0_7 = arith.constant 0 : index
    %c0_8 = arith.constant 0 : index
    %10 = vector.load %arg1[%c1, %c0_7, %c0_8] : memref<3x128x128xf32, #tpu.memory_space<vmem>>, vector<1x128x128xf32>
    %11 = vector.shape_cast %10 : vector<1x128x128xf32> to vector<128x128xf32>
    %cst_9 = arith.constant dense<0.000000e+00> : vector<8x128xf32>
    %12 = tpu.matmul %9, %11, %cst_9 {dimension_numbers = #tpu.dot_dimension_numbers<[1], [0], [0], [1], [0, 0, 1, 1], [], []>} : vector<8x128xf32>, vector<128x128xf32>, vector<8x128xf32> -> vector<8x128xf32>
    %c1_10 = arith.constant 1 : index
    %c0_11 = arith.constant 0 : index
    %13 = vector.load %arg4[%c1_10, %c0_11] : memref<16x128xf32, #tpu.memory_space<vmem>>, vector<1x128xf32>
    %14 = vector.broadcast %13 : vector<1x128xf32> to vector<8x128xf32>
    %15 = arith.addf %12, %14 : vector<8x128xf32>
    %cst_12 = arith.constant 0.000000e+00 : f32
    %16 = vector.broadcast %cst_12 : f32 to vector<8x128xf32>
    %17 = arith.maximumf %15, %16 : vector<8x128xf32>
    %18 = arith.addf %8, %17 : vector<8x128xf32>
    %19 = arith.addf %9, %17 : vector<8x128xf32>
    %c2 = arith.constant 2 : index
    %c0_13 = arith.constant 0 : index
    %c0_14 = arith.constant 0 : index
    %20 = vector.load %arg1[%c2, %c0_13, %c0_14] : memref<3x128x128xf32, #tpu.memory_space<vmem>>, vector<1x128x128xf32>
    %21 = vector.shape_cast %20 : vector<1x128x128xf32> to vector<128x128xf32>
    %cst_15 = arith.constant dense<0.000000e+00> : vector<8x128xf32>
    %22 = tpu.matmul %19, %21, %cst_15 {dimension_numbers = #tpu.dot_dimension_numbers<[1], [0], [0], [1], [0, 0, 1, 1], [], []>} : vector<8x128xf32>, vector<128x128xf32>, vector<8x128xf32> -> vector<8x128xf32>
    %c2_16 = arith.constant 2 : index
    %c0_17 = arith.constant 0 : index
    %23 = vector.load %arg4[%c2_16, %c0_17] : memref<16x128xf32, #tpu.memory_space<vmem>>, vector<1x128xf32>
    %24 = vector.broadcast %23 : vector<1x128xf32> to vector<8x128xf32>
    %25 = arith.addf %22, %24 : vector<8x128xf32>
    %cst_18 = arith.constant 0.000000e+00 : f32
    %26 = vector.broadcast %cst_18 : f32 to vector<8x128xf32>
    %27 = arith.maximumf %25, %26 : vector<8x128xf32>
    %28 = arith.addf %18, %27 : vector<8x128xf32>
    %c0_19 = arith.constant 0 : index
    %c0_20 = arith.constant 0 : index
    %29 = vector.load %arg2[%c0_19, %c0_20] : memref<128x128xf32, #tpu.memory_space<vmem>>, vector<128x128xf32>
    %cst_21 = arith.constant dense<0.000000e+00> : vector<8x128xf32>
    %30 = tpu.matmul %28, %29, %cst_21 {dimension_numbers = #tpu.dot_dimension_numbers<[1], [0], [0], [1], [0, 0, 1, 1], [], []>} : vector<8x128xf32>, vector<128x128xf32>, vector<8x128xf32> -> vector<8x128xf32>
    %c3 = arith.constant 3 : index
    %c0_22 = arith.constant 0 : index
    %31 = vector.load %arg4[%c3, %c0_22] : memref<16x128xf32, #tpu.memory_space<vmem>>, vector<1x128xf32>
    %32 = vector.broadcast %31 : vector<1x128xf32> to vector<8x128xf32>
    %33 = arith.addf %30, %32 : vector<8x128xf32>
    %cst_23 = arith.constant 0.000000e+00 : f32
    %34 = vector.broadcast %cst_23 : f32 to vector<8x128xf32>
    %35 = arith.maximumf %33, %34 : vector<8x128xf32>
    %cst_24 = arith.constant dense<0.000000e+00> : vector<128xf32>
    %36 = vector.multi_reduction <add>, %35, %cst_24 [0] : vector<8x128xf32> to vector<128xf32>
    %37 = vector.shape_cast %36 : vector<128xf32> to vector<1x128xf32>
    %cst_25 = arith.constant 8.000000e+00 : f32
    %38 = vector.broadcast %cst_25 : f32 to vector<1x128xf32>
    %39 = arith.divf %37, %38 : vector<1x128xf32>
    %40 = arith.mulf %35, %35 : vector<8x128xf32>
    %cst_26 = arith.constant dense<0.000000e+00> : vector<128xf32>
    %41 = vector.multi_reduction <add>, %40, %cst_26 [0] : vector<8x128xf32> to vector<128xf32>
    %42 = vector.shape_cast %41 : vector<128xf32> to vector<1x128xf32>
    %cst_27 = arith.constant 8.000000e+00 : f32
    %43 = vector.broadcast %cst_27 : f32 to vector<1x128xf32>
    %44 = arith.divf %42, %43 : vector<1x128xf32>
    %45 = arith.mulf %39, %39 : vector<1x128xf32>
    %46 = arith.subf %44, %45 : vector<1x128xf32>
    %c4 = arith.constant 4 : index
    %c0_28 = arith.constant 0 : index
    %47 = vector.load %arg4[%c4, %c0_28] : memref<16x128xf32, #tpu.memory_space<vmem>>, vector<1x128xf32>
    %cst_29 = arith.constant 9.99999974E-6 : f32
    %48 = vector.broadcast %cst_29 : f32 to vector<1x128xf32>
    %49 = arith.addf %46, %48 : vector<1x128xf32>
    %50 = math.rsqrt %49 : vector<1x128xf32>
    %51 = arith.mulf %47, %50 : vector<1x128xf32>
    %52 = vector.broadcast %51 : vector<1x128xf32> to vector<8x128xf32>
    %53 = arith.mulf %35, %52 : vector<8x128xf32>
    %c5 = arith.constant 5 : index
    %c0_30 = arith.constant 0 : index
    %54 = vector.load %arg4[%c5, %c0_30] : memref<16x128xf32, #tpu.memory_space<vmem>>, vector<1x128xf32>
    %55 = arith.mulf %39, %51 : vector<1x128xf32>
    %56 = arith.subf %54, %55 : vector<1x128xf32>
    %57 = vector.broadcast %56 : vector<1x128xf32> to vector<8x128xf32>
    %58 = arith.addf %53, %57 : vector<8x128xf32>
    %c0_31 = arith.constant 0 : index
    %c0_32 = arith.constant 0 : index
    %59 = vector.load %arg3[%c0_31, %c0_32] : memref<128x128xf32, #tpu.memory_space<vmem>>, vector<128x128xf32>
    %cst_33 = arith.constant dense<0.000000e+00> : vector<8x128xf32>
    %60 = tpu.matmul %58, %59, %cst_33 {dimension_numbers = #tpu.dot_dimension_numbers<[1], [0], [0], [1], [0, 0, 1, 1], [], []>} : vector<8x128xf32>, vector<128x128xf32>, vector<8x128xf32> -> vector<8x128xf32>
    %c6 = arith.constant 6 : index
    %c0_34 = arith.constant 0 : index
    %61 = vector.load %arg4[%c6, %c0_34] : memref<16x128xf32, #tpu.memory_space<vmem>>, vector<1x128xf32>
    %62 = vector.broadcast %61 : vector<1x128xf32> to vector<8x128xf32>
    %63 = arith.addf %60, %62 : vector<8x128xf32>
    %cst_35 = arith.constant 0.000000e+00 : f32
    %64 = vector.broadcast %cst_35 : f32 to vector<8x128xf32>
    %65 = arith.maximumf %63, %64 : vector<8x128xf32>
    %cst_36 = arith.constant dense<0.000000e+00> : vector<128xf32>
    %66 = vector.multi_reduction <add>, %65, %cst_36 [0] : vector<8x128xf32> to vector<128xf32>
    %67 = vector.shape_cast %66 : vector<128xf32> to vector<1x128xf32>
    %cst_37 = arith.constant 8.000000e+00 : f32
    %68 = vector.broadcast %cst_37 : f32 to vector<1x128xf32>
    %69 = arith.divf %67, %68 : vector<1x128xf32>
    %70 = arith.mulf %65, %65 : vector<8x128xf32>
    %cst_38 = arith.constant dense<0.000000e+00> : vector<128xf32>
    %71 = vector.multi_reduction <add>, %70, %cst_38 [0] : vector<8x128xf32> to vector<128xf32>
    %72 = vector.shape_cast %71 : vector<128xf32> to vector<1x128xf32>
    %cst_39 = arith.constant 8.000000e+00 : f32
    %73 = vector.broadcast %cst_39 : f32 to vector<1x128xf32>
    %74 = arith.divf %72, %73 : vector<1x128xf32>
    %75 = arith.mulf %69, %69 : vector<1x128xf32>
    %76 = arith.subf %74, %75 : vector<1x128xf32>
    %c7 = arith.constant 7 : index
    %c0_40 = arith.constant 0 : index
    %77 = vector.load %arg4[%c7, %c0_40] : memref<16x128xf32, #tpu.memory_space<vmem>>, vector<1x128xf32>
    %cst_41 = arith.constant 9.99999974E-6 : f32
    %78 = vector.broadcast %cst_41 : f32 to vector<1x128xf32>
    %79 = arith.addf %76, %78 : vector<1x128xf32>
    %80 = math.rsqrt %79 : vector<1x128xf32>
    %81 = arith.mulf %77, %80 : vector<1x128xf32>
    %82 = vector.broadcast %81 : vector<1x128xf32> to vector<8x128xf32>
    %83 = arith.mulf %65, %82 : vector<8x128xf32>
    %c8 = arith.constant 8 : index
    %c0_42 = arith.constant 0 : index
    %84 = vector.load %arg4[%c8, %c0_42] : memref<16x128xf32, #tpu.memory_space<vmem>>, vector<1x128xf32>
    %85 = arith.mulf %69, %81 : vector<1x128xf32>
    %86 = arith.subf %84, %85 : vector<1x128xf32>
    %87 = vector.broadcast %86 : vector<1x128xf32> to vector<8x128xf32>
    %88 = arith.addf %83, %87 : vector<8x128xf32>
    %c0_43 = arith.constant 0 : index
    %c0_44 = arith.constant 0 : index
    %89 = vector.load %arg5[%c0_43, %c0_44] : memref<8x128xf32, #tpu.memory_space<vmem>>, vector<8x128xf32>
    tpu.vector_store %arg5[%c0_43, %c0_44], %88 {strides = array<i32>} : memref<8x128xf32, #tpu.memory_space<vmem>>, vector<8x128xf32>,
    return
  }
}

</mosaic_0001>

<llo_original>
// kernel: wavenet_pallas.1
$region0: #{wavenet_pallas.1}
  #allocation0 [shape = 'u32[]', space=smem, size = 0x4, offset = 0x4, fixed_abs, tag = 'smem constant byte address 0x4 - core index']
  #allocation1 [shape = 'u32[144,128]{1,0:T(1,128)}', space=vmem, size = 0x12000, scoped, tag = 'internal scratch']
  %s0 = inlined_call_operand.vmem [shape: f32[8,128], index: 0, kind: input, shape index: {}]
  %s1 = inlined_call_operand.hbm [shape: f32[3,128,128], index: 1, kind: input, shape index: {}]
  %s2 = inlined_call_operand.hbm [shape: f32[128,128], index: 2, kind: input, shape index: {}]
  %s3 = inlined_call_operand.hbm [shape: f32[128,128], index: 3, kind: input, shape index: {}]
  %s4 = inlined_call_operand.vmem [shape: f32[16,128], index: 4, kind: input, shape index: {}]
  %s5 = inlined_call_operand.hbm [shape: f32[8,128], index: 5, kind: output, shape index: {}]
  %s6 = sld [smem:[#allocation0]]
  $region42: #{wavenet_pallas.1} parent=0
    _
  %s8 = ssub.s32 1, %s6
  %s9 = scalar_select 0, %s8, %s6
  $region1: #{wavenet_pallas.1} parent=0
    #allocation2 [shape = 'u8[196608]{0}', space=vmem, size = 0x30000, scoped, tag = 'input window, operand 1, single buffered']
    #allocation3 [shape = 's32[1]{0}', space=sflag, size = 0x4, scoped, tag = 'scoped memory for wavenet_pallas.1']
    #allocation4 [shape = 's32[1]{0}', space=sflag, size = 0x4, scoped, tag = 'scoped memory for wavenet_pallas.1']
    #allocation5 [shape = 'u8[65536]{0}', space=vmem, size = 0x10000, scoped, tag = 'input window, operand 2, single buffered']
    #allocation6 [shape = 's32[1]{0}', space=sflag, size = 0x4, scoped, tag = 'scoped memory for wavenet_pallas.1']
    #allocation7 [shape = 'u8[65536]{0}', space=vmem, size = 0x10000, scoped, tag = 'input window, operand 3, single buffered']
    #allocation8 [shape = 'u8[4096]{0}', space=vmem, size = 0x1000, scoped, tag = 'output window, operand 0, single buffered']
    %10 = vsyncpa [#allocation3], 0
    %11 = vsyncpa [#allocation6], 0
    %12 = vsyncpa [#allocation4], 0
    // Predicated region
    $region2: #{wavenet_pallas.1} parent=1 // pred_check
      _
    $region3: #{wavenet_pallas.1} parent=1 // pred_check_branch
      %14 = sbr.rel (0) target = $region5
    $region4: #{wavenet_pallas.1} parent=1 // pred_region
      _
    $region5: #{wavenet_pallas.1} parent=1 // pred_fallthru
      _
    // Predicated region
    $region6: #{wavenet_pallas.1} parent=1 // pred_check
      _
    $region7: #{wavenet_pallas.1} parent=1 // pred_check_branch
      %16 = sbr.rel (0) target = $region9
    $region8: #{wavenet_pallas.1} parent=1 // pred_region
      %s18 = ssub.s32 6144, 6144
      %19 = vsyncadd [#allocation3], %s18
      %s20 = sshll.u32 [#allocation2], 4
      %s21 = int_to_ptr.vmem [resolvable:$true] %s20
      %26 = dma.hbm_to_vmem [thread:$0]  %s1, 6144, %s21, [#allocation3], 128, 128, 8
    $region9: #{wavenet_pallas.1} parent=1 // pred_fallthru
      _
    // Predicated region
    $region10: #{wavenet_pallas.1} parent=1 // pred_check
      _
    $region11: #{wavenet_pallas.1} parent=1 // pred_check_branch
      %28 = sbr.rel (0) target = $region13
    $region12: #{wavenet_pallas.1} parent=1 // pred_region
      %s30 = ssub.s32 2048, 2048
      %31 = vsyncadd [#allocation6], %s30
      %s32 = sshll.u32 [#allocation5], 4
      %s33 = int_to_ptr.vmem [resolvable:$true] %s32
      %38 = dma.hbm_to_vmem [thread:$0]  %s2, 2048, %s33, [#allocation6], 128, 128, 8
    $region13: #{wavenet_pallas.1} parent=1 // pred_fallthru
      _
    // Predicated region
    $region14: #{wavenet_pallas.1} parent=1 // pred_check
      _
    $region15: #{wavenet_pallas.1} parent=1 // pred_check_branch
      %40 = sbr.rel (0) target = $region17
    $region16: #{wavenet_pallas.1} parent=1 // pred_region
      %s42 = ssub.s32 2048, 2048
      %43 = vsyncadd [#allocation6], %s42
      %s44 = sshll.u32 [#allocation7], 4
      %s45 = int_to_ptr.vmem [resolvable:$true] %s44
      %50 = dma.hbm_to_vmem [thread:$0]  %s3, 2048, %s45, [#allocation6], 128, 128, 8
    $region17: #{wavenet_pallas.1} parent=1 // pred_fallthru
      _
    // Predicated region
    $region18: #{wavenet_pallas.1} parent=1 // pred_check
      _
    $region19: #{wavenet_pallas.1} parent=1 // pred_check_branch
      %52 = sbr.rel (0) target = $region21
    $region20: #{wavenet_pallas.1} parent=1 // pred_region
      _
    $region21: #{wavenet_pallas.1} parent=1 // pred_fallthru
      _
    // Predicated region
    $region22: #{wavenet_pallas.1} parent=1 // pred_check
      _
    $region23: #{wavenet_pallas.1} parent=1 // pred_check_branch
      %54 = sbr.rel (0) target = $region25
    $region24: #{wavenet_pallas.1} parent=1 // pred_region
      %55 = dma.done [#allocation3], 6144
    $region25: #{wavenet_pallas.1} parent=1 // pred_fallthru
      _
    // Predicated region
    $region26: #{wavenet_pallas.1} parent=1 // pred_check
      _
    $region27: #{wavenet_pallas.1} parent=1 // pred_check_branch
      %57 = sbr.rel (0) target = $region29
    $region28: #{wavenet_pallas.1} parent=1 // pred_region
      %58 = dma.done [#allocation6], 2048
    $region29: #{wavenet_pallas.1} parent=1 // pred_fallthru
      _
    // Predicated region
    $region30: #{wavenet_pallas.1} parent=1 // pred_check
      _
    $region31: #{wavenet_pallas.1} parent=1 // pred_check_branch
      %60 = sbr.rel (0) target = $region33
    $region32: #{wavenet_pallas.1} parent=1 // pred_region
      %61 = dma.done [#allocation6], 2048
    $region33: #{wavenet_pallas.1} parent=1 // pred_fallthru
      _
    %v62 = vld [vmem:[%s0] sm:$0xff]
    %v63 = vld [vmem:[#allocation2] sm:$0xff]
    %v64 = vld [vmem:[#allocation2 + $0x8] sm:$0xff]
    %v65 = vld [vmem:[#allocation2 + $0x10] sm:$0xff]
    %v66 = vld [vmem:[#allocation2 + $0x18] sm:$0xff]
    %v67 = vld [vmem:[#allocation2 + $0x20] sm:$0xff]
    %v68 = vld [vmem:[#allocation2 + $0x28] sm:$0xff]
    %v69 = vld [vmem:[#allocation2 + $0x30] sm:$0xff]
    %v70 = vld [vmem:[#allocation2 + $0x38] sm:$0xff]
    %v71 = vld [vmem:[#allocation2 + $0x40] sm:$0xff]
    %v72 = vld [vmem:[#allocation2 + $0x48] sm:$0xff]
    %v73 = vld [vmem:[#allocation2 + $0x50] sm:$0xff]
    %v74 = vld [vmem:[#allocation2 + $0x58] sm:$0xff]
    %v75 = vld [vmem:[#allocation2 + $0x60] sm:$0xff]
    %v76 = vld [vmem:[#allocation2 + $0x68] sm:$0xff]
    %v77 = vld [vmem:[#allocation2 + $0x70] sm:$0xff]
    %v78 = vld [vmem:[#allocation2 + $0x78] sm:$0xff]
    %v79 = vld [vmem:[%s4] sm:$0x1]
    %v80 = vlaneseq
    %v81 = vshrl.u32 %v80, 7
    %v82 = vsub.s32 0, %v81
    %v83 = vrot.slane %v79, %v82
    %84 = vmatprep.subr.mxu0 0.0
    %85 = vmatpush1.msra.mxu0 %v63
    %86 = vmatprep.subr.mxu0 0.0
    %87 = vmatpush1.msra.mxu0 %v64
    %88 = vmatprep.subr.mxu0 0.0
    %89 = vmatpush1.msra.mxu0 %v65
    %90 = vmatprep.subr.mxu0 0.0
    %91 = vmatpush1.msra.mxu0 %v66
    %92 = vmatprep.subr.mxu0 0.0
    %93 = vmatpush1.msra.mxu0 %v67
    %94 = vmatprep.subr.mxu0 0.0
    %95 = vmatpush1.msra.mxu0 %v68
    %96 = vmatprep.subr.mxu0 0.0
    %97 = vmatpush1.msra.mxu0 %v69
    %98 = vmatprep.subr.mxu0 0.0
    %99 = vmatpush1.msra.mxu0 %v70
    %100 = vmatprep.subr.mxu0 0.0
    %101 = vmatpush1.msra.mxu0 %v71
    %102 = vmatprep.subr.mxu0 0.0
    %103 = vmatpush1.msra.mxu0 %v72
    %104 = vmatprep.subr.mxu0 0.0
    %105 = vmatpush1.msra.mxu0 %v73
    %106 = vmatprep.subr.mxu0 0.0
    %107 = vmatpush1.msra.mxu0 %v74
    %108 = vmatprep.subr.mxu0 0.0
    %109 = vmatpush1.msra.mxu0 %v75
    %110 = vmatprep.subr.mxu0 0.0
    %111 = vmatpush1.msra.mxu0 %v76
    %112 = vmatprep.subr.mxu0 0.0
    %113 = vmatpush1.msra.mxu0 %v77
    %114 = vmatprep.subr.mxu0 0.0
    %115 = vmatpush1.msra.mxu0 %v78
    %116 = vmatprep.subr.mxu0 0.0
    %117 = vmatpush1.msra.mxu0 0.0
    %118 = vmatprep.subr.mxu0 0.0
    %119 = vmatpush1.msra.mxu0 0.0
    %120 = vmatprep.subr.mxu0 0.0
    %121 = vmatpush1.msra.mxu0 0.0
    %122 = vmatprep.subr.mxu0 0.0
    %123 = vmatpush1.msra.mxu0 0.0
    %124 = vmatprep.subr.mxu0 0.0
    %125 = vmatpush1.msra.mxu0 0.0
    %126 = vmatprep.subr.mxu0 0.0
    %127 = vmatpush1.msra.mxu0 0.0
    %128 = vmatprep.subr.mxu0 0.0
    %129 = vmatpush1.msra.mxu0 0.0
    %130 = vmatprep.subr.mxu0 0.0
    %131 = vmatpush1.msra.mxu0 0.0
    %132 = vmatprep.subr.mxu0 0.0
    %133 = vmatpush1.msra.mxu0 0.0
    %134 = vmatprep.subr.mxu0 0.0
    %135 = vmatpush1.msra.mxu0 0.0
    %136 = vmatprep.subr.mxu0 0.0
    %137 = vmatpush1.msra.mxu0 0.0
    %138 = vmatprep.subr.mxu0 0.0
    %139 = vmatpush1.msra.mxu0 0.0
    %140 = vmatprep.subr.mxu0 0.0
    %141 = vmatpush1.msra.mxu0 0.0
    %142 = vmatprep.subr.mxu0 0.0
    %143 = vmatpush1.msra.mxu0 0.0
    %144 = vmatprep.subr.mxu0 0.0
    %145 = vmatpush1.msra.mxu0 0.0
    %146 = vmatprep.subr.mxu0 0.0
    %147 = vmatpush1.msra.mxu0 0.0
    %148 = vmatprep.mubr.f32.mxu0 0.0
    %149 = vmatmul.mubr.f32.gmra.mrb[0].mxu0 %v62
    %v150 = vpop.f32.mrb[0].mxu0
    %v151 = vadd.f32 %v83, %v150
    %v152 = vpop.f32.mrb[0].mxu0
    %153 = vdwg.mxu0
    %v154 = vmax.f32 %v151, 0.0
    %v155 = vadd.f32 %v62, %v154
    %s156 = scalar_lea.vmem [#allocation2], 128
    %v157 = vld [vmem:[%s156] sm:$0xff]
    %v158 = vld [vmem:[%s156 + $0x8] sm:$0xff]
    %v159 = vld [vmem:[%s156 + $0x10] sm:$0xff]
    %v160 = vld [vmem:[%s156 + $0x18] sm:$0xff]
    %v161 = vld [vmem:[%s156 + $0x20] sm:$0xff]
    %v162 = vld [vmem:[%s156 + $0x28] sm:$0xff]
    %v163 = vld [vmem:[%s156 + $0x30] sm:$0xff]
    %v164 = vld [vmem:[%s156 + $0x38] sm:$0xff]
    %v165 = vld [vmem:[%s156 + $0x40] sm:$0xff]
    %v166 = vld [vmem:[%s156 + $0x48] sm:$0xff]
    %v167 = vld [vmem:[%s156 + $0x50] sm:$0xff]
    %v168 = vld [vmem:[%s156 + $0x58] sm:$0xff]
    %v169 = vld [vmem:[%s156 + $0x60] sm:$0xff]
    %v170 = vld [vmem:[%s156 + $0x68] sm:$0xff]
    %v171 = vld [vmem:[%s156 + $0x70] sm:$0xff]
    %v172 = vld [vmem:[%s156 + $0x78] sm:$0xff]
    %v173 = vld [vmem:[%s4 + $0x1] sm:$0x1]
    %v174 = vlaneseq
    %v175 = vshrl.u32 %v174, 7
    %v176 = vsub.s32 0, %v175
    %v177 = vrot.slane %v173, %v176
    %178 = vmatprep.subr.mxu0 0.0
    %179 = vmatpush1.msra.mxu0 %v157
    %180 = vmatprep.subr.mxu0 0.0
    %181 = vmatpush1.msra.mxu0 %v158
    %182 = vmatprep.subr.mxu0 0.0
    %183 = vmatpush1.msra.mxu0 %v159
    %184 = vmatprep.subr.mxu0 0.0
    %185 = vmatpush1.msra.mxu0 %v160
    %186 = vmatprep.subr.mxu0 0.0
    %187 = vmatpush1.msra.mxu0 %v161
    %188 = vmatprep.subr.mxu0 0.0
    %189 = vmatpush1.msra.mxu0 %v162
    %190 = vmatprep.subr.mxu0 0.0
    %191 = vmatpush1.msra.mxu0 %v163
    %192 = vmatprep.subr.mxu0 0.0
    %193 = vmatpush1.msra.mxu0 %v164
    %194 = vmatprep.subr.mxu0 0.0
    %195 = vmatpush1.msra.mxu0 %v165
    %196 = vmatprep.subr.mxu0 0.0
    %197 = vmatpush1.msra.mxu0 %v166
    %198 = vmatprep.subr.mxu0 0.0
    %199 = vmatpush1.msra.mxu0 %v167
    %200 = vmatprep.subr.mxu0 0.0
    %201 = vmatpush1.msra.mxu0 %v168
    %202 = vmatprep.subr.mxu0 0.0
    %203 = vmatpush1.msra.mxu0 %v169
    %204 = vmatprep.subr.mxu0 0.0
    %205 = vmatpush1.msra.mxu0 %v170
    %206 = vmatprep.subr.mxu0 0.0
    %207 = vmatpush1.msra.mxu0 %v171
    %208 = vmatprep.subr.mxu0 0.0
    %209 = vmatpush1.msra.mxu0 %v172
    %210 = vmatprep.subr.mxu0 0.0
    %211 = vmatpush1.msra.mxu0 0.0
    %212 = vmatprep.subr.mxu0 0.0
    %213 = vmatpush1.msra.mxu0 0.0
    %214 = vmatprep.subr.mxu0 0.0
    %215 = vmatpush1.msra.mxu0 0.0
    %216 = vmatprep.subr.mxu0 0.0
    %217 = vmatpush1.msra.mxu0 0.0
    %218 = vmatprep.subr.mxu0 0.0
    %219 = vmatpush1.msra.mxu0 0.0
    %220 = vmatprep.subr.mxu0 0.0
    %221 = vmatpush1.msra.mxu0 0.0
    %222 = vmatprep.subr.mxu0 0.0
    %223 = vmatpush1.msra.mxu0 0.0
    %224 = vmatprep.subr.mxu0 0.0
    %225 = vmatpush1.msra.mxu0 0.0
    %226 = vmatprep.subr.mxu0 0.0
    %227 = vmatpush1.msra.mxu0 0.0
    %228 = vmatprep.subr.mxu0 0.0
    %229 = vmatpush1.msra.mxu0 0.0
    %230 = vmatprep.subr.mxu0 0.0
    %231 = vmatpush1.msra.mxu0 0.0
    %232 = vmatprep.subr.mxu0 0.0
    %233 = vmatpush1.msra.mxu0 0.0
    %234 = vmatprep.subr.mxu0 0.0
    %235 = vmatpush1.msra.mxu0 0.0
    %236 = vmatprep.subr.mxu0 0.0
    %237 = vmatpush1.msra.mxu0 0.0
    %238 = vmatprep.subr.mxu0 0.0
    %239 = vmatpush1.msra.mxu0 0.0
    %240 = vmatprep.subr.mxu0 0.0
    %241 = vmatpush1.msra.mxu0 0.0
    %242 = vmatprep.mubr.f32.mxu0 0.0
    %243 = vmatmul.mubr.f32.gmra.mrb[0].mxu0 %v155
    %v244 = vpop.f32.mrb[0].mxu0
    %v245 = vadd.f32 %v177, %v244
    %v246 = vpop.f32.mrb[0].mxu0
    %247 = vdwg.mxu0
    %v248 = vmax.f32 %v245, 0.0
    %v249 = vadd.f32 %v154, %v248
    %v250 = vadd.f32 %v155, %v248
    %s251 = scalar_lea.vmem [#allocation2], 256
    %v252 = vld [vmem:[%s251] sm:$0xff]
    %v253 = vld [vmem:[%s251 + $0x8] sm:$0xff]
    %v254 = vld [vmem:[%s251 + $0x10] sm:$0xff]
    %v255 = vld [vmem:[%s251 + $0x18] sm:$0xff]
    %v256 = vld [vmem:[%s251 + $0x20] sm:$0xff]
    %v257 = vld [vmem:[%s251 + $0x28] sm:$0xff]
    %v258 = vld [vmem:[%s251 + $0x30] sm:$0xff]
    %v259 = vld [vmem:[%s251 + $0x38] sm:$0xff]
    %v260 = vld [vmem:[%s251 + $0x40] sm:$0xff]
    %v261 = vld [vmem:[%s251 + $0x48] sm:$0xff]
    %v262 = vld [vmem:[%s251 + $0x50] sm:$0xff]
    %v263 = vld [vmem:[%s251 + $0x58] sm:$0xff]
    %v264 = vld [vmem:[%s251 + $0x60] sm:$0xff]
    %v265 = vld [vmem:[%s251 + $0x68] sm:$0xff]
    %v266 = vld [vmem:[%s251 + $0x70] sm:$0xff]
    %v267 = vld [vmem:[%s251 + $0x78] sm:$0xff]
    %v268 = vld [vmem:[%s4 + $0x2] sm:$0x1]
    %v269 = vlaneseq
    %v270 = vshrl.u32 %v269, 7
    %v271 = vsub.s32 0, %v270
    %v272 = vrot.slane %v268, %v271
    %273 = vmatprep.subr.mxu0 0.0
    %274 = vmatpush1.msra.mxu0 %v252
    %275 = vmatprep.subr.mxu0 0.0
    %276 = vmatpush1.msra.mxu0 %v253
    %277 = vmatprep.subr.mxu0 0.0
    %278 = vmatpush1.msra.mxu0 %v254
    %279 = vmatprep.subr.mxu0 0.0
    %280 = vmatpush1.msra.mxu0 %v255
    %281 = vmatprep.subr.mxu0 0.0
    %282 = vmatpush1.msra.mxu0 %v256
    %283 = vmatprep.subr.mxu0 0.0
    %284 = vmatpush1.msra.mxu0 %v257
    %285 = vmatprep.subr.mxu0 0.0
    %286 = vmatpush1.msra.mxu0 %v258
    %287 = vmatprep.subr.mxu0 0.0
    %288 = vmatpush1.msra.mxu0 %v259
    %289 = vmatprep.subr.mxu0 0.0
    %290 = vmatpush1.msra.mxu0 %v260
    %291 = vmatprep.subr.mxu0 0.0
    %292 = vmatpush1.msra.mxu0 %v261
    %293 = vmatprep.subr.mxu0 0.0
    %294 = vmatpush1.msra.mxu0 %v262
    %295 = vmatprep.subr.mxu0 0.0
    %296 = vmatpush1.msra.mxu0 %v263
    %297 = vmatprep.subr.mxu0 0.0
    %298 = vmatpush1.msra.mxu0 %v264
    %299 = vmatprep.subr.mxu0 0.0
    %300 = vmatpush1.msra.mxu0 %v265
    %301 = vmatprep.subr.mxu0 0.0
    %302 = vmatpush1.msra.mxu0 %v266
    %303 = vmatprep.subr.mxu0 0.0
    %304 = vmatpush1.msra.mxu0 %v267
    %305 = vmatprep.subr.mxu0 0.0
    %306 = vmatpush1.msra.mxu0 0.0
    %307 = vmatprep.subr.mxu0 0.0
    %308 = vmatpush1.msra.mxu0 0.0
    %309 = vmatprep.subr.mxu0 0.0
    %310 = vmatpush1.msra.mxu0 0.0
    %311 = vmatprep.subr.mxu0 0.0
    %312 = vmatpush1.msra.mxu0 0.0
    %313 = vmatprep.subr.mxu0 0.0
    %314 = vmatpush1.msra.mxu0 0.0
    %315 = vmatprep.subr.mxu0 0.0
    %316 = vmatpush1.msra.mxu0 0.0
    %317 = vmatprep.subr.mxu0 0.0
    %318 = vmatpush1.msra.mxu0 0.0
    %319 = vmatprep.subr.mxu0 0.0
    %320 = vmatpush1.msra.mxu0 0.0
    %321 = vmatprep.subr.mxu0 0.0
    %322 = vmatpush1.msra.mxu0 0.0
    %323 = vmatprep.subr.mxu0 0.0
    %324 = vmatpush1.msra.mxu0 0.0
    %325 = vmatprep.subr.mxu0 0.0
    %326 = vmatpush1.msra.mxu0 0.0
    %327 = vmatprep.subr.mxu0 0.0
    %328 = vmatpush1.msra.mxu0 0.0
    %329 = vmatprep.subr.mxu0 0.0
    %330 = vmatpush1.msra.mxu0 0.0
    %331 = vmatprep.subr.mxu0 0.0
    %332 = vmatpush1.msra.mxu0 0.0
    %333 = vmatprep.subr.mxu0 0.0
    %334 = vmatpush1.msra.mxu0 0.0
    %335 = vmatprep.subr.mxu0 0.0
    %336 = vmatpush1.msra.mxu0 0.0
    %337 = vmatprep.mubr.f32.mxu0 0.0
    %338 = vmatmul.mubr.f32.gmra.mrb[0].mxu0 %v250
    %v339 = vpop.f32.mrb[0].mxu0
    %v340 = vadd.f32 %v272, %v339
    %v341 = vpop.f32.mrb[0].mxu0
    %342 = vdwg.mxu0
    %v343 = vmax.f32 %v340, 0.0
    %v344 = vadd.f32 %v249, %v343
    %v345 = vld [vmem:[#allocation5] sm:$0xff]
    %v346 = vld [vmem:[#allocation5 + $0x8] sm:$0xff]
    %v347 = vld [vmem:[#allocation5 + $0x10] sm:$0xff]
    %v348 = vld [vmem:[#allocation5 + $0x18] sm:$0xff]
    %v349 = vld [vmem:[#allocation5 + $0x20] sm:$0xff]
    %v350 = vld [vmem:[#allocation5 + $0x28] sm:$0xff]
    %v351 = vld [vmem:[#allocation5 + $0x30] sm:$0xff]
    %v352 = vld [vmem:[#allocation5 + $0x38] sm:$0xff]
    %v353 = vld [vmem:[#allocation5 + $0x40] sm:$0xff]
    %v354 = vld [vmem:[#allocation5 + $0x48] sm:$0xff]
    %v355 = vld [vmem:[#allocation5 + $0x50] sm:$0xff]
    %v356 = vld [vmem:[#allocation5 + $0x58] sm:$0xff]
    %v357 = vld [vmem:[#allocation5 + $0x60] sm:$0xff]
    %v358 = vld [vmem:[#allocation5 + $0x68] sm:$0xff]
    %v359 = vld [vmem:[#allocation5 + $0x70] sm:$0xff]
    %v360 = vld [vmem:[#allocation5 + $0x78] sm:$0xff]
    %v361 = vld [vmem:[%s4 + $0x3] sm:$0x1]
    %v362 = vlaneseq
    %v363 = vshrl.u32 %v362, 7
    %v364 = vsub.s32 0, %v363
    %v365 = vrot.slane %v361, %v364
    %366 = vmatprep.subr.mxu0 0.0
    %367 = vmatpush1.msra.mxu0 %v345
    %368 = vmatprep.subr.mxu0 0.0
    %369 = vmatpush1.msra.mxu0 %v346
    %370 = vmatprep.subr.mxu0 0.0
    %371 = vmatpush1.msra.mxu0 %v347
    %372 = vmatprep.subr.mxu0 0.0
    %373 = vmatpush1.msra.mxu0 %v348
    %374 = vmatprep.subr.mxu0 0.0
    %375 = vmatpush1.msra.mxu0 %v349
    %376 = vmatprep.subr.mxu0 0.0
    %377 = vmatpush1.msra.mxu0 %v350
    %378 = vmatprep.subr.mxu0 0.0
    %379 = vmatpush1.msra.mxu0 %v351
    %380 = vmatprep.subr.mxu0 0.0
    %381 = vmatpush1.msra.mxu0 %v352
    %382 = vmatprep.subr.mxu0 0.0
    %383 = vmatpush1.msra.mxu0 %v353
    %384 = vmatprep.subr.mxu0 0.0
    %385 = vmatpush1.msra.mxu0 %v354
    %386 = vmatprep.subr.mxu0 0.0
    %387 = vmatpush1.msra.mxu0 %v355
    %388 = vmatprep.subr.mxu0 0.0
    %389 = vmatpush1.msra.mxu0 %v356
    %390 = vmatprep.subr.mxu0 0.0
    %391 = vmatpush1.msra.mxu0 %v357
    %392 = vmatprep.subr.mxu0 0.0
    %393 = vmatpush1.msra.mxu0 %v358
    %394 = vmatprep.subr.mxu0 0.0
    %395 = vmatpush1.msra.mxu0 %v359
    %396 = vmatprep.subr.mxu0 0.0
    %397 = vmatpush1.msra.mxu0 %v360
    %398 = vmatprep.subr.mxu0 0.0
    %399 = vmatpush1.msra.mxu0 0.0
    %400 = vmatprep.subr.mxu0 0.0
    %401 = vmatpush1.msra.mxu0 0.0
    %402 = vmatprep.subr.mxu0 0.0
    %403 = vmatpush1.msra.mxu0 0.0
    %404 = vmatprep.subr.mxu0 0.0
    %405 = vmatpush1.msra.mxu0 0.0
    %406 = vmatprep.subr.mxu0 0.0
    %407 = vmatpush1.msra.mxu0 0.0
    %408 = vmatprep.subr.mxu0 0.0
    %409 = vmatpush1.msra.mxu0 0.0
    %410 = vmatprep.subr.mxu0 0.0
    %411 = vmatpush1.msra.mxu0 0.0
    %412 = vmatprep.subr.mxu0 0.0
    %413 = vmatpush1.msra.mxu0 0.0
    %414 = vmatprep.subr.mxu0 0.0
    %415 = vmatpush1.msra.mxu0 0.0
    %416 = vmatprep.subr.mxu0 0.0
    %417 = vmatpush1.msra.mxu0 0.0
    %418 = vmatprep.subr.mxu0 0.0
    %419 = vmatpush1.msra.mxu0 0.0
    %420 = vmatprep.subr.mxu0 0.0
    %421 = vmatpush1.msra.mxu0 0.0
    %422 = vmatprep.subr.mxu0 0.0
    %423 = vmatpush1.msra.mxu0 0.0
    %424 = vmatprep.subr.mxu0 0.0
    %425 = vmatpush1.msra.mxu0 0.0
    %426 = vmatprep.subr.mxu0 0.0
    %427 = vmatpush1.msra.mxu0 0.0
    %428 = vmatprep.subr.mxu0 0.0
    %429 = vmatpush1.msra.mxu0 0.0
    %430 = vmatprep.mubr.f32.mxu0 0.0
    %431 = vmatmul.mubr.f32.gmra.mrb[0].mxu0 %v344
    %v432 = vpop.f32.mrb[0].mxu0
    %v433 = vadd.f32 %v365, %v432
    %v434 = vpop.f32.mrb[0].mxu0
    %435 = vdwg.mxu0
    %v436 = vmax.f32 %v433, 0.0
    %v437 = vrot.slane %v436, 4
    %v438 = vadd.f32 %v436, %v437
    %v439 = vrot.slane %v438, 2
    %v440 = vadd.f32 %v438, %v439
    %v441 = vrot.slane %v440, 1
    %v442 = vadd.f32 %v440, %v441
    %v443 = vrcp.pop 8.0
    %v444 = vmul.f32 %v442, %v443
    %v445 = vmul.f32 %v436, %v436
    %v446 = vrot.slane %v445, 4
    %v447 = vadd.f32 %v445, %v446
    %v448 = vrot.slane %v447, 2
    %v449 = vadd.f32 %v447, %v448
    %v450 = vrot.slane %v449, 1
    %v451 = vadd.f32 %v449, %v450
    %v452 = vmul.f32 %v451, %v443
    %v453 = vmul.f32 %v444, %v444
    %v454 = vsub.f32 %v452, %v453
    %v455 = vld [vmem:[%s4 + $0x4] sm:$0x1]
    %v456 = vadd.f32 %v454, 1e-05
    %v457 = vrsqrt.pop %v456
    %v458 = vmul.f32 %v455, %v457
    %v459 = vlaneseq
    %v460 = vshrl.u32 %v459, 7
    %v461 = vsub.s32 0, %v460
    %v462 = vrot.slane %v458, %v461
    %v463 = vmul.f32 %v436, %v462
    %v464 = vld [vmem:[%s4 + $0x5] sm:$0x1]
    %v465 = vmul.f32 %v444, %v458
    %v466 = vsub.f32 %v464, %v465
    %v467 = vlaneseq
    %v468 = vshrl.u32 %v467, 7
    %v469 = vsub.s32 0, %v468
    %v470 = vrot.slane %v466, %v469
    %v471 = vadd.f32 %v463, %v470
    %v472 = vld [vmem:[#allocation7] sm:$0xff]
    %v473 = vld [vmem:[#allocation7 + $0x8] sm:$0xff]
    %v474 = vld [vmem:[#allocation7 + $0x10] sm:$0xff]
    %v475 = vld [vmem:[#allocation7 + $0x18] sm:$0xff]
    %v476 = vld [vmem:[#allocation7 + $0x20] sm:$0xff]
    %v477 = vld [vmem:[#allocation7 + $0x28] sm:$0xff]
    %v478 = vld [vmem:[#allocation7 + $0x30] sm:$0xff]
    %v479 = vld [vmem:[#allocation7 + $0x38] sm:$0xff]
    %v480 = vld [vmem:[#allocation7 + $0x40] sm:$0xff]
    %v481 = vld [vmem:[#allocation7 + $0x48] sm:$0xff]
    %v482 = vld [vmem:[#allocation7 + $0x50] sm:$0xff]
    %v483 = vld [vmem:[#allocation7 + $0x58] sm:$0xff]
    %v484 = vld [vmem:[#allocation7 + $0x60] sm:$0xff]
    %v485 = vld [vmem:[#allocation7 + $0x68] sm:$0xff]
    %v486 = vld [vmem:[#allocation7 + $0x70] sm:$0xff]
    %v487 = vld [vmem:[#allocation7 + $0x78] sm:$0xff]
    %v488 = vld [vmem:[%s4 + $0x6] sm:$0x1]
    %v489 = vlaneseq
    %v490 = vshrl.u32 %v489, 7
    %v491 = vsub.s32 0, %v490
    %v492 = vrot.slane %v488, %v491
    %493 = vmatprep.subr.mxu0 0.0
    %494 = vmatpush1.msra.mxu0 %v472
    %495 = vmatprep.subr.mxu0 0.0
    %496 = vmatpush1.msra.mxu0 %v473
    %497 = vmatprep.subr.mxu0 0.0
    %498 = vmatpush1.msra.mxu0 %v474
    %499 = vmatprep.subr.mxu0 0.0
    %500 = vmatpush1.msra.mxu0 %v475
    %501 = vmatprep.subr.mxu0 0.0
    %502 = vmatpush1.msra.mxu0 %v476
    %503 = vmatprep.subr.mxu0 0.0
    %504 = vmatpush1.msra.mxu0 %v477
    %505 = vmatprep.subr.mxu0 0.0
    %506 = vmatpush1.msra.mxu0 %v478
    %507 = vmatprep.subr.mxu0 0.0
    %508 = vmatpush1.msra.mxu0 %v479
    %509 = vmatprep.subr.mxu0 0.0
    %510 = vmatpush1.msra.mxu0 %v480
    %511 = vmatprep.subr.mxu0 0.0
    %512 = vmatpush1.msra.mxu0 %v481
    %513 = vmatprep.subr.mxu0 0.0
    %514 = vmatpush1.msra.mxu0 %v482
    %515 = vmatprep.subr.mxu0 0.0
    %516 = vmatpush1.msra.mxu0 %v483
    %517 = vmatprep.subr.mxu0 0.0
    %518 = vmatpush1.msra.mxu0 %v484
    %519 = vmatprep.subr.mxu0 0.0
    %520 = vmatpush1.msra.mxu0 %v485
    %521 = vmatprep.subr.mxu0 0.0
    %522 = vmatpush1.msra.mxu0 %v486
    %523 = vmatprep.subr.mxu0 0.0
    %524 = vmatpush1.msra.mxu0 %v487
    %525 = vmatprep.subr.mxu0 0.0
    %526 = vmatpush1.msra.mxu0 0.0
    %527 = vmatprep.subr.mxu0 0.0
    %528 = vmatpush1.msra.mxu0 0.0
    %529 = vmatprep.subr.mxu0 0.0
    %530 = vmatpush1.msra.mxu0 0.0
    %531 = vmatprep.subr.mxu0 0.0
    %532 = vmatpush1.msra.mxu0 0.0
    %533 = vmatprep.subr.mxu0 0.0
    %534 = vmatpush1.msra.mxu0 0.0
    %535 = vmatprep.subr.mxu0 0.0
    %536 = vmatpush1.msra.mxu0 0.0
    %537 = vmatprep.subr.mxu0 0.0
    %538 = vmatpush1.msra.mxu0 0.0
    %539 = vmatprep.subr.mxu0 0.0
    %540 = vmatpush1.msra.mxu0 0.0
    %541 = vmatprep.subr.mxu0 0.0
    %542 = vmatpush1.msra.mxu0 0.0
    %543 = vmatprep.subr.mxu0 0.0
    %544 = vmatpush1.msra.mxu0 0.0
    %545 = vmatprep.subr.mxu0 0.0
    %546 = vmatpush1.msra.mxu0 0.0
    %547 = vmatprep.subr.mxu0 0.0
    %548 = vmatpush1.msra.mxu0 0.0
    %549 = vmatprep.subr.mxu0 0.0
    %550 = vmatpush1.msra.mxu0 0.0
    %551 = vmatprep.subr.mxu0 0.0
    %552 = vmatpush1.msra.mxu0 0.0
    %553 = vmatprep.subr.mxu0 0.0
    %554 = vmatpush1.msra.mxu0 0.0
    %555 = vmatprep.subr.mxu0 0.0
    %556 = vmatpush1.msra.mxu0 0.0
    %557 = vmatprep.mubr.f32.mxu0 0.0
    %558 = vmatmul.mubr.f32.gmra.mrb[0].mxu0 %v471
    %v559 = vpop.f32.mrb[0].mxu0
    %v560 = vadd.f32 %v492, %v559
    %v561 = vpop.f32.mrb[0].mxu0
    %562 = vdwg.mxu0
    %v563 = vmax.f32 %v560, 0.0
    %v564 = vrot.slane %v563, 4
    %v565 = vadd.f32 %v563, %v564
    %v566 = vrot.slane %v565, 2
    %v567 = vadd.f32 %v565, %v566
    %v568 = vrot.slane %v567, 1
    %v569 = vadd.f32 %v567, %v568
    %v570 = vmul.f32 %v569, %v443
    %v571 = vmul.f32 %v563, %v563
    %v572 = vrot.slane %v571, 4
    %v573 = vadd.f32 %v571, %v572
    %v574 = vrot.slane %v573, 2
    %v575 = vadd.f32 %v573, %v574
    %v576 = vrot.slane %v575, 1
    %v577 = vadd.f32 %v575, %v576
    %v578 = vmul.f32 %v577, %v443
    %v579 = vmul.f32 %v570, %v570
    %v580 = vsub.f32 %v578, %v579
    %v581 = vld [vmem:[%s4 + $0x7] sm:$0x1]
    %v582 = vadd.f32 %v580, 1e-05
    %v583 = vrsqrt.pop %v582
    %v584 = vmul.f32 %v581, %v583
    %v585 = vlaneseq
    %v586 = vshrl.u32 %v585, 7
    %v587 = vsub.s32 0, %v586
    %v588 = vrot.slane %v584, %v587
    %v589 = vmul.f32 %v563, %v588
    %v590 = vld [vmem:[%s4 + $0x8] sm:$0x1]
    %v591 = vmul.f32 %v570, %v584
    %v592 = vsub.f32 %v590, %v591
    %v593 = vlaneseq
    %v594 = vshrl.u32 %v593, 7
    %v595 = vsub.s32 0, %v594
    %v596 = vrot.slane %v592, %v595
    %v597 = vadd.f32 %v589, %v596
    %598 = vst [vmem:[#allocation8] sm:$0xff] %v597
    // Predicated region
    $region34: #{wavenet_pallas.1} parent=1 // pred_check
      _
    $region35: #{wavenet_pallas.1} parent=1 // pred_check_branch
      %600 = sbr.rel (0) target = $region37
    $region36: #{wavenet_pallas.1} parent=1 // pred_region
      %s602 = ssub.s32 128, 128
      %603 = vsyncadd [#allocation4], %s602
      %s605 = sshll.u32 [#allocation8], 4
      %s606 = int_to_ptr.vmem [resolvable:$true] %s605
      %608 = dma.vmem_to_hbm [thread:$0]  %s606, 128, %s5, [#allocation4]
    $region37: #{wavenet_pallas.1} parent=1 // pred_fallthru
      _
    // Predicated region
    $region38: #{wavenet_pallas.1} parent=1 // pred_check
      _
    $region39: #{wavenet_pallas.1} parent=1 // pred_check_branch
      %610 = sbr.rel (0) target = $region41
    $region40: #{wavenet_pallas.1} parent=1 // pred_region
      %611 = dma.done [#allocation4], 128
    $region41: #{wavenet_pallas.1} parent=1 // pred_fallthru
      _
    %612 = vsyncpa [#allocation3], 1
    %613 = vsyncpa [#allocation6], 1
    %614 = vsyncpa [#allocation4], 1

</llo_original>
